<compile_context>
chip_gen: v7x
topology: tpu7x:2x2x1
jax: 0.10.0
libtpu: 0.0.40
codegen_flags: <defaults>
</compile_context>

<pallas_src>
import math

import jax
import jax.numpy as jnp
from jax.experimental import pallas as pl
from jax.experimental.pallas import tpu as pltpu


# ---------------------------------------------------------------------------
# Kernel: copy of the (already selected via BlockSpec) slab.
# ---------------------------------------------------------------------------
def _copy_kernel(x_ref, o_ref):
    o_ref[...] = x_ref[...]


# ---------------------------------------------------------------------------
# Layout helpers
# ---------------------------------------------------------------------------
_TARGET_BLOCK_BYTES = 4 * 1024 * 1024      # ~4 MiB per grid step
_MAX_SINGLE_BLOCK_BYTES = 16 * 1024 * 1024  # above this, skip the kernel


def _sublane(dtype) -> int:
    """Sublane packing for the dtype (8 for 4-byte, 16 for 2-byte, 32 for 1-byte)."""
    return {4: 8, 2: 16, 1: 32}.get(jnp.dtype(dtype).itemsize, 8)


def _tiling(out_shape, dtype):
    """Return (rows, lanes, row_tile) for a lane-dense 2D view, or None if no
    safe tiling exists (caller falls back to a plain slice)."""
    flat = math.prod(out_shape)
    if flat == 0 or len(out_shape) == 0:
        return None
    itemsize = jnp.dtype(dtype).itemsize
    sub = _sublane(dtype)

    if flat % 128 == 0:
        lanes = 128
        rows = flat // 128
    else:
        # Keep the original trailing dim: a block whose last dim equals the
        # full array dim is always legal (no (8,128) divisibility needed).
        lanes = out_shape[-1]
        rows = flat // lanes

    # Fixed row tile targeting ~4 MiB per block, aligned to sublane packing.
    tr = (_TARGET_BLOCK_BYTES // max(lanes * itemsize, 1)) // sub * sub
    tr = max(tr, sub)
    if tr >= rows:
        tr = rows  # single block; block dims == full array dims -> legal

    if tr * lanes * itemsize > _MAX_SINGLE_BLOCK_BYTES:
        return None  # pathological shape: don't risk a VMEM blowup
    return rows, lanes, tr


# ---------------------------------------------------------------------------
# IgnoreIndexes.forward
# ---------------------------------------------------------------------------
def ignore_indexes(x):
    """forward(x) = x[0].

    `x` may be a tuple/list (the MaxPool (output, indices) case) or a stacked
    array whose leading axis plays the tuple role.
    """
    # Tuple / list case: the selection is free in Python.  Issuing an identity
    # copy kernel would only add HBM read+write traffic, so we don't.
    if isinstance(x, (tuple, list)):
        return x[0]

    # Stacked-array case: x has shape (N, ...); return x[0].
    if x.ndim <= 1:
        return x[0]

    out_shape = x.shape[1:]
    tiling = _tiling(out_shape, x.dtype)
    if tiling is None:
        # No safe Pallas tiling (empty / pathological shape) -> plain slice.
        return x[0]

    rows, lanes, tr = tiling
    grid = (pl.cdiv(rows, tr),)

    # Contiguous reshape of the stacked input: free / fusable in the wrapper.
    x3 = x.reshape(x.shape[0], rows, lanes)

    out2 = pl.pallas_call(
        _copy_kernel,
        out_shape=jax.ShapeDtypeStruct((rows, lanes), x.dtype),
        grid=grid,
        # `None` squeezes the leading (tuple) axis; index_map pins it to block
        # 0, so only element 0 is ever DMA'd from HBM.
        in_specs=[pl.BlockSpec((None, tr, lanes), lambda i: (0, i, 0))],
        out_specs=pl.BlockSpec((tr, lanes), lambda i: (i, 0)),
        compiler_params=pltpu.CompilerParams(
            dimension_semantics=("parallel",),
            vmem_limit_bytes=32 * 1024 * 1024,
        ),
    )(x3)
    return out2.reshape(out_shape)


# ---------------------------------------------------------------------------
# Self-test
# ---------------------------------------------------------------------------
if __name__ == "__main__":
    key = jax.random.PRNGKey(0)

    # Stacked form, f32: leading axis plays the (output, indices) tuple role.
    x = jax.random.normal(key, (2, 4, 16, 16), jnp.float32)
    y = jax.jit(ignore_indexes)(x)
    jax.block_until_ready(y)
    assert y.shape == (4, 16, 16)
    assert bool(jnp.allclose(y, x[0]))
    assert bool(jnp.all(jnp.isfinite(y)))

    # Stacked form, bf16 with a non-128-divisible flat size (fallback tiling).
    xb = jax.random.normal(jax.random.PRNGKey(2), (2, 3, 8, 40), jnp.bfloat16)
    yb = jax.jit(ignore_indexes)(xb)
    jax.block_until_ready(yb)
    assert yb.shape == (3, 8, 40)
    assert bool(jnp.all(yb == xb[0]))

    # Tuple form: the actual MaxPool2d(return_indices=True) usage in ISNet —
    # no kernel launched, just the selection.
    out = jax.random.normal(jax.random.PRNGKey(1), (2, 4, 8, 8), jnp.float32)
    idx = jnp.zeros((2, 4, 8, 8), jnp.int32)
    y2 = jax.jit(lambda t: ignore_indexes(t))((out, idx))
    jax.block_until_ready(y2)
    assert y2.shape == out.shape
    assert bool(jnp.allclose(y2, out))

    print("KERNEL_OK")
</pallas_src>

<mosaic_0001>
module attributes {stable_mosaic.version = 11 : i64} {
  func.func @_copy_kernel(%arg0: i32, %arg1: memref<1x8x128xf32, #tpu.memory_space<vmem>>, %arg2: memref<8x128xf32, #tpu.memory_space<vmem>>) attributes {dimension_semantics = [#tpu.dimension_semantics<parallel>], iteration_bounds = array<i64: 1>, scalar_prefetch = 0 : i64, scratch_operands = 0 : i64, tpu.core_type = #tpu.core_type<tc>, window_params = [{transform_indices = @transform_0, window_bounds = array<i64: 1, 8, 128>}, {transform_indices = @transform_1, window_bounds = array<i64: 8, 128>}]} {
    %c0 = arith.constant 0 : index
    %c0_0 = arith.constant 0 : index
    %c0_1 = arith.constant 0 : index
    %0 = vector.load %arg1[%c0, %c0_0, %c0_1] : memref<1x8x128xf32, #tpu.memory_space<vmem>>, vector<1x8x128xf32>
    %1 = vector.shape_cast %0 : vector<1x8x128xf32> to vector<8x128xf32>
    %c0_2 = arith.constant 0 : index
    %c0_3 = arith.constant 0 : index
    %2 = vector.load %arg2[%c0_2, %c0_3] : memref<8x128xf32, #tpu.memory_space<vmem>>, vector<8x128xf32>
    tpu.vector_store %arg2[%c0_2, %c0_3], %1 {strides = array<i32>} : memref<8x128xf32, #tpu.memory_space<vmem>>, vector<8x128xf32>,
    return
  }
  func.func @transform_0(%arg0: i32) -> (i32, i32, i32) {
    %c0_i32 = arith.constant 0 : i32
    %c0_i32_0 = arith.constant 0 : i32
    %c0_i32_1 = arith.constant 0 : i32
    return %c0_i32, %arg0, %c0_i32_0 : i32, i32, i32
  }
  func.func @transform_1(%arg0: i32) -> (i32, i32) {
    %c0_i32 = arith.constant 0 : i32
    %c0_i32_0 = arith.constant 0 : i32
    return %arg0, %c0_i32 : i32, i32
  }
}

</mosaic_0001>

<llo_original>
// kernel: ignore_indexes.1
$region0: #{ignore_indexes.1}
  #allocation0 [shape = 'u32[]', space=smem, size = 0x4, offset = 0x4, fixed_abs, tag = 'smem constant byte address 0x4 - core index']
  #allocation1 [shape = 'u32[144,128]{1,0:T(1,128)}', space=vmem, size = 0x12000, scoped, tag = 'internal scratch']
  %s0 = inlined_call_operand.vmem [shape: f32[2,8,128], index: 0, kind: input, shape index: {}]
  %s1 = inlined_call_operand.vmem [shape: f32[8,128], index: 1, kind: output, shape index: {}]
  %s2 = sld [smem:[#allocation0]]
  $region14: #{ignore_indexes.1} parent=0
    _
  %s4 = ssub.s32 1, %s2
  %s5 = scalar_select 0, %s4, %s2
  // Predicated region
  $region2: #{ignore_indexes.1} parent=0 // pred_check
    _
  $region3: #{ignore_indexes.1} parent=0 // pred_check_branch
    %7 = sbr.rel (0) target = $region5
  $region4: #{ignore_indexes.1} parent=0 // pred_region
    _
  $region5: #{ignore_indexes.1} parent=0 // pred_fallthru
    _
  %v8 = vld [vmem:[%s0] sm:$0xff]
  %9 = vst [vmem:[%s1] sm:$0xff] %v8
  // Predicated region
  $region6: #{ignore_indexes.1} parent=0 // pred_check
    _
  $region7: #{ignore_indexes.1} parent=0 // pred_check_branch
    %11 = sbr.rel (0) target = $region9
  $region8: #{ignore_indexes.1} parent=0 // pred_region
    _
  $region9: #{ignore_indexes.1} parent=0 // pred_fallthru
    _
  // Predicated region
  $region10: #{ignore_indexes.1} parent=0 // pred_check
    _
  $region11: #{ignore_indexes.1} parent=0 // pred_check_branch
    %13 = sbr.rel (0) target = $region13
  $region12: #{ignore_indexes.1} parent=0 // pred_region
    _
  $region13: #{ignore_indexes.1} parent=0 // pred_fallthru
    _

</llo_original>
